<compile_context>
chip_gen: v7x
topology: tpu7x:2x2x1
jax: 0.10.0
libtpu: 0.0.40
codegen_flags: <defaults>
</compile_context>

<pallas_src>
import math

import jax
import jax.numpy as jnp
from jax.experimental import pallas as pl
from jax.experimental.pallas import tpu as pltpu

_LANE = 128
_SUBLANE = 8


def _round_up(n, m):
    return ((n + m - 1) // m) * m


def _cdiv(a, b):
    return -(-a // b)


def gnb_kernel(x_ref, w2_ref, w1_ref, bias_ref, out_ref):
    # x_ref:   (TB, F)        batch tile in its native dtype
    # w2_ref:  (F, C_pad)     weights for x*x  (grid-invariant)
    # w1_ref:  (F, C_pad)     weights for x    (grid-invariant)
    # bias_ref:(8, C_pad)     per-class constant, row-replicated (grid-invariant)
    # out_ref: (TB, C_pad)
    x = x_ref[...].astype(jnp.float32)
    out_ref[...] = (
        jnp.dot(x * x, w2_ref[...], preferred_element_type=jnp.float32)
        + jnp.dot(x, w1_ref[...], preferred_element_type=jnp.float32)
        + bias_ref[0:1, :]
    )


def gnb_forward(x, means, variances, class_priors, *, block_rows=1024):
    B, F = x.shape
    C = means.shape[0]

    # ---- Hoisted class-side preprocessing (done once, outside the grid) ----
    v = jnp.abs(variances.astype(jnp.float32))                         # (C, F)
    inv_v = 1.0 / v
    m = means.astype(jnp.float32)
    log_det = -0.5 * jnp.sum(jnp.log(2.0 * jnp.pi * v), axis=-1)       # (C,)
    m_quad = -0.5 * jnp.sum(m * m * inv_v, axis=-1)                    # (C,)
    bias = log_det + m_quad + jnp.log(class_priors.astype(jnp.float32))

    # ---- Class-axis padding for lane-dense output / full MXU columns ----
    C_pad = _round_up(C, _LANE)
    # Zero padding columns contribute exactly zero and are sliced off below.
    w2 = jnp.pad((-0.5 * inv_v).T, ((0, 0), (0, C_pad - C)))           # (F, C_pad)
    w1 = jnp.pad((m * inv_v).T, ((0, 0), (0, C_pad - C)))              # (F, C_pad)
    bias_p = jnp.broadcast_to(
        jnp.pad(bias, (0, C_pad - C)).reshape(1, C_pad), (_SUBLANE, C_pad)
    )                                                                  # (8, C_pad)

    # ---- Batch tiling: no HBM pad copy; aim for >=2 grid steps (megacore) ----
    TB = min(
        block_rows,
        max(_SUBLANE, _round_up(_cdiv(B, 4), _SUBLANE)),
        _round_up(B, _SUBLANE),
    )
    grid = (_cdiv(B, TB),)

    # VMEM budget: double-buffered x/out tiles + resident weights/bias (+margin).
    x_bytes = x.dtype.itemsize
    tile_bytes = (
        2 * TB * F * x_bytes          # x tile, double-buffered
        + 2 * TB * C_pad * 4          # out tile, double-buffered
        + 2 * 2 * F * C_pad * 4       # two weight halves (worst-case 2 bufs)
        + 2 * _SUBLANE * C_pad * 4    # bias
    )
    try:
        vmem_cap = pltpu.get_tpu_info().vmem_capacity_bytes
    except Exception:
        vmem_cap = 64 * 1024 * 1024
    vmem_limit = int(
        min(vmem_cap - 16 * 1024 * 1024, max(16 * 1024 * 1024, 2 * tile_bytes))
    )

    cost = pl.CostEstimate(
        flops=2 * 2 * B * F * C_pad,
        transcendentals=0,
        bytes_accessed=B * F * x_bytes + 4 * (B * C_pad + 2 * F * C_pad),
    )

    out = pl.pallas_call(
        gnb_kernel,
        out_shape=jax.ShapeDtypeStruct((B, C_pad), jnp.float32),
        grid=grid,
        in_specs=[
            pl.BlockSpec((TB, F), lambda i: (i, 0)),
            pl.BlockSpec((F, C_pad), lambda i: (0, 0)),
            pl.BlockSpec((F, C_pad), lambda i: (0, 0)),
            pl.BlockSpec((_SUBLANE, C_pad), lambda i: (0, 0)),
        ],
        out_specs=pl.BlockSpec((TB, C_pad), lambda i: (i, 0)),
        compiler_params=pltpu.CompilerParams(
            dimension_semantics=("parallel",),
            vmem_limit_bytes=vmem_limit,
        ),
        cost_estimate=cost,
    )(x, w2, w1, bias_p)

    return out[:, :C]


def gnb_reference(x, means, variances, class_priors):
    # Direct transcription of the PyTorch forward (for verification).
    v = jnp.abs(variances)
    xb = x[:, None, :]                                                 # (B, 1, F)
    ll = -0.5 * jnp.log(2.0 * math.pi * v) - (xb - means) ** 2 / v / 2.0
    return jnp.sum(ll, axis=-1) + jnp.log(class_priors)


if __name__ == "__main__":
    # Module hyperparameters (small, consistent with the PyTorch __init__).
    features = 32
    classes = 4
    batch = 8

    key = jax.random.PRNGKey(0)
    kx, kp, kx2 = jax.random.split(key, 3)

    # Deterministic parameter init mirroring reset_parameters():
    #   means = eye(classes, features), variances = 1, class_priors ~ U(0, 1)
    means = jnp.eye(classes, features, dtype=jnp.float32)
    variances = jnp.ones((classes, features), dtype=jnp.float32)
    class_priors = jax.random.uniform(kp, (classes,), dtype=jnp.float32,
                                      minval=0.0, maxval=1.0)

    # Test 1: tiny batch (single grid step).
    x = jax.random.normal(kx, (batch, features), dtype=jnp.float32)
    out = jax.block_until_ready(gnb_forward(x, means, variances, class_priors))
    ref = gnb_reference(x, means, variances, class_priors)
    assert out.shape == (batch, classes)
    assert jnp.allclose(out, ref, rtol=1e-4, atol=1e-4), (out, ref)

    # Test 2: non-aligned batch with multiple grid steps (exercises ragged
    # last block + megacore-friendly tiling without any HBM pad copies).
    x2 = jax.random.normal(kx2, (300, features), dtype=jnp.float32)
    out2 = jax.block_until_ready(gnb_forward(x2, means, variances, class_priors))
    ref2 = gnb_reference(x2, means, variances, class_priors)
    assert out2.shape == (300, classes)
    assert jnp.allclose(out2, ref2, rtol=1e-4, atol=1e-4)

    print("KERNEL_OK")
</pallas_src>

<mosaic_0001>
module attributes {stable_mosaic.version = 11 : i64} {
  func.func @gnb_kernel(%arg0: i32, %arg1: memref<8x32xf32, #tpu.memory_space<vmem>>, %arg2: memref<32x128xf32, #tpu.memory_space<vmem>>, %arg3: memref<32x128xf32, #tpu.memory_space<vmem>>, %arg4: memref<8x128xf32, #tpu.memory_space<vmem>>, %arg5: memref<8x128xf32, #tpu.memory_space<vmem>>) attributes {dimension_semantics = [#tpu.dimension_semantics<parallel>], iteration_bounds = array<i64: 1>, scalar_prefetch = 0 : i64, scratch_operands = 0 : i64, tpu.core_type = #tpu.core_type<tc>, window_params = [{transform_indices = @transform_0, window_bounds = array<i64: 8, 32>}, {pipeline_mode = #tpu.pipeline_mode<synchronous>, transform_indices = @transform_1, window_bounds = array<i64: 32, 128>}, {pipeline_mode = #tpu.pipeline_mode<synchronous>, transform_indices = @transform_2, window_bounds = array<i64: 32, 128>}, {pipeline_mode = #tpu.pipeline_mode<synchronous>, transform_indices = @transform_3, window_bounds = array<i64: 8, 128>}, {transform_indices = @transform_4, window_bounds = array<i64: 8, 128>}]} {
    %c0 = arith.constant 0 : index
    %c0_0 = arith.constant 0 : index
    %0 = vector.load %arg1[%c0, %c0_0] : memref<8x32xf32, #tpu.memory_space<vmem>>, vector<8x32xf32>
    %1 = arith.mulf %0, %0 : vector<8x32xf32>
    %c0_1 = arith.constant 0 : index
    %c0_2 = arith.constant 0 : index
    %2 = vector.load %arg2[%c0_1, %c0_2] : memref<32x128xf32, #tpu.memory_space<vmem>>, vector<32x128xf32>
    %cst = arith.constant dense<0.000000e+00> : vector<8x128xf32>
    %3 = tpu.matmul %1, %2, %cst {dimension_numbers = #tpu.dot_dimension_numbers<[1], [0], [0], [1], [0, 0, 1, 1], [], []>} : vector<8x32xf32>, vector<32x128xf32>, vector<8x128xf32> -> vector<8x128xf32>
    %c0_3 = arith.constant 0 : index
    %c0_4 = arith.constant 0 : index
    %4 = vector.load %arg3[%c0_3, %c0_4] : memref<32x128xf32, #tpu.memory_space<vmem>>, vector<32x128xf32>
    %cst_5 = arith.constant dense<0.000000e+00> : vector<8x128xf32>
    %5 = tpu.matmul %0, %4, %cst_5 {dimension_numbers = #tpu.dot_dimension_numbers<[1], [0], [0], [1], [0, 0, 1, 1], [], []>} : vector<8x32xf32>, vector<32x128xf32>, vector<8x128xf32> -> vector<8x128xf32>
    %6 = arith.addf %3, %5 : vector<8x128xf32>
    %c0_6 = arith.constant 0 : index
    %c0_7 = arith.constant 0 : index
    %7 = vector.load %arg4[%c0_6, %c0_7] : memref<8x128xf32, #tpu.memory_space<vmem>>, vector<1x128xf32>
    %8 = vector.broadcast %7 : vector<1x128xf32> to vector<8x128xf32>
    %9 = arith.addf %6, %8 : vector<8x128xf32>
    %c0_8 = arith.constant 0 : index
    %c0_9 = arith.constant 0 : index
    %10 = vector.load %arg5[%c0_8, %c0_9] : memref<8x128xf32, #tpu.memory_space<vmem>>, vector<8x128xf32>
    tpu.vector_store %arg5[%c0_8, %c0_9], %9 {strides = array<i32>} : memref<8x128xf32, #tpu.memory_space<vmem>>, vector<8x128xf32>,
    return
  }
  func.func @transform_0(%arg0: i32) -> (i32, i32) {
    %c0_i32 = arith.constant 0 : i32
    %c0_i32_0 = arith.constant 0 : i32
    return %arg0, %c0_i32 : i32, i32
  }
  func.func @transform_1(%arg0: i32) -> (i32, i32) {
    %c0_i32 = arith.constant 0 : i32
    %c0_i32_0 = arith.constant 0 : i32
    %c0_i32_1 = arith.constant 0 : i32
    return %c0_i32, %c0_i32_0 : i32, i32
  }
  func.func @transform_2(%arg0: i32) -> (i32, i32) {
    %c0_i32 = arith.constant 0 : i32
    %c0_i32_0 = arith.constant 0 : i32
    %c0_i32_1 = arith.constant 0 : i32
    return %c0_i32, %c0_i32_0 : i32, i32
  }
  func.func @transform_3(%arg0: i32) -> (i32, i32) {
    %c0_i32 = arith.constant 0 : i32
    %c0_i32_0 = arith.constant 0 : i32
    %c0_i32_1 = arith.constant 0 : i32
    return %c0_i32, %c0_i32_0 : i32, i32
  }
  func.func @transform_4(%arg0: i32) -> (i32, i32) {
    %c0_i32 = arith.constant 0 : i32
    %c0_i32_0 = arith.constant 0 : i32
    return %arg0, %c0_i32 : i32, i32
  }
}

</mosaic_0001>

<llo_original>
// kernel: tpu_custom_call.1
$region0: #{tpu_custom_call.1}
  #allocation0 [shape = 'u32[]', space=smem, size = 0x4, offset = 0x4, fixed_abs, tag = 'smem constant byte address 0x4 - core index']
  #allocation1 [shape = 'u32[144,128]{1,0:T(1,128)}', space=vmem, size = 0x12000, scoped, tag = 'internal scratch']
  %s0 = inlined_call_operand.hbm [shape: f32[8,32], index: 0, kind: input, shape index: {}]
  %s1 = inlined_call_operand.hbm [shape: f32[32,128], index: 1, kind: input, shape index: {}]
  %s2 = inlined_call_operand.hbm [shape: f32[32,128], index: 2, kind: input, shape index: {}]
  %s3 = inlined_call_operand.vmem [shape: f32[8,128], index: 3, kind: input, shape index: {}]
  %s4 = inlined_call_operand.hbm [shape: f32[8,128], index: 4, kind: output, shape index: {}]
  %s5 = sld [smem:[#allocation0]]
  $region38: #{tpu_custom_call.1} parent=0
    _
  %s7 = ssub.s32 1, %s5
  %s8 = scalar_select 0, %s7, %s5
  $region1: #{tpu_custom_call.1} parent=0
    #allocation2 [shape = 'u8[4096]{0}', space=vmem, size = 0x1000, scoped, tag = 'input window, operand 0, single buffered']
    #allocation3 [shape = 's32[1]{0}', space=sflag, size = 0x4, scoped, tag = 'scoped memory for tpu_custom_call.1']
    #allocation4 [shape = 's32[1]{0}', space=sflag, size = 0x4, scoped, tag = 'scoped memory for tpu_custom_call.1']
    #allocation5 [shape = 'u8[16384]{0}', space=vmem, size = 0x4000, scoped, tag = 'input window, operand 1, single buffered']
    #allocation6 [shape = 's32[1]{0}', space=sflag, size = 0x4, scoped, tag = 'scoped memory for tpu_custom_call.1']
    #allocation7 [shape = 'u8[16384]{0}', space=vmem, size = 0x4000, scoped, tag = 'input window, operand 2, single buffered']
    #allocation8 [shape = 'u8[4096]{0}', space=vmem, size = 0x1000, scoped, tag = 'output window, operand 0, single buffered']
    %9 = vsyncpa [#allocation3], 0
    %10 = vsyncpa [#allocation6], 0
    %11 = vsyncpa [#allocation4], 0
    // Predicated region
    $region2: #{tpu_custom_call.1} parent=1 // pred_check
      _
    $region3: #{tpu_custom_call.1} parent=1 // pred_check_branch
      %13 = sbr.rel (0) target = $region5
    $region4: #{tpu_custom_call.1} parent=1 // pred_region
      %s15 = ssub.s32 128, 128
      %16 = vsyncadd [#allocation3], %s15
      %s18 = sshll.u32 [#allocation2], 4
      %s19 = int_to_ptr.vmem [resolvable:$true] %s18
      %21 = dma.hbm_to_vmem [thread:$0]  %s0, 128, %s19, [#allocation3]
    $region5: #{tpu_custom_call.1} parent=1 // pred_fallthru
      _
    // Predicated region
    $region6: #{tpu_custom_call.1} parent=1 // pred_check
      _
    $region7: #{tpu_custom_call.1} parent=1 // pred_check_branch
      %23 = sbr.rel (0) target = $region9
    $region8: #{tpu_custom_call.1} parent=1 // pred_region
      %s25 = ssub.s32 512, 512
      %26 = vsyncadd [#allocation6], %s25
      %s27 = sshll.u32 [#allocation5], 4
      %s28 = int_to_ptr.vmem [resolvable:$true] %s27
      %33 = dma.hbm_to_vmem [thread:$0]  %s1, 512, %s28, [#allocation6], 128, 128, 8
    $region9: #{tpu_custom_call.1} parent=1 // pred_fallthru
      _
    // Predicated region
    $region10: #{tpu_custom_call.1} parent=1 // pred_check
      _
    $region11: #{tpu_custom_call.1} parent=1 // pred_check_branch
      %35 = sbr.rel (0) target = $region13
    $region12: #{tpu_custom_call.1} parent=1 // pred_region
      %s37 = ssub.s32 512, 512
      %38 = vsyncadd [#allocation6], %s37
      %s39 = sshll.u32 [#allocation7], 4
      %s40 = int_to_ptr.vmem [resolvable:$true] %s39
      %45 = dma.hbm_to_vmem [thread:$0]  %s2, 512, %s40, [#allocation6], 128, 128, 8
    $region13: #{tpu_custom_call.1} parent=1 // pred_fallthru
      _
    // Predicated region
    $region14: #{tpu_custom_call.1} parent=1 // pred_check
      _
    $region15: #{tpu_custom_call.1} parent=1 // pred_check_branch
      %47 = sbr.rel (0) target = $region17
    $region16: #{tpu_custom_call.1} parent=1 // pred_region
      _
    $region17: #{tpu_custom_call.1} parent=1 // pred_fallthru
      _
    // Predicated region
    $region18: #{tpu_custom_call.1} parent=1 // pred_check
      _
    $region19: #{tpu_custom_call.1} parent=1 // pred_check_branch
      %49 = sbr.rel (0) target = $region21
    $region20: #{tpu_custom_call.1} parent=1 // pred_region
      %50 = dma.done [#allocation3], 128
    $region21: #{tpu_custom_call.1} parent=1 // pred_fallthru
      _
    // Predicated region
    $region22: #{tpu_custom_call.1} parent=1 // pred_check
      _
    $region23: #{tpu_custom_call.1} parent=1 // pred_check_branch
      %52 = sbr.rel (0) target = $region25
    $region24: #{tpu_custom_call.1} parent=1 // pred_region
      %53 = dma.done [#allocation6], 512
    $region25: #{tpu_custom_call.1} parent=1 // pred_fallthru
      _
    // Predicated region
    $region26: #{tpu_custom_call.1} parent=1 // pred_check
      _
    $region27: #{tpu_custom_call.1} parent=1 // pred_check_branch
      %55 = sbr.rel (0) target = $region29
    $region28: #{tpu_custom_call.1} parent=1 // pred_region
      %56 = dma.done [#allocation6], 512
    $region29: #{tpu_custom_call.1} parent=1 // pred_fallthru
      _
    %v57 = vld [vmem:[#allocation2] sm:$0xff]
    %v58 = vmul.f32 %v57, %v57
    %v59 = vld [vmem:[#allocation5] sm:$0xff]
    %v60 = vld [vmem:[#allocation5 + $0x8] sm:$0xff]
    %v61 = vld [vmem:[#allocation5 + $0x10] sm:$0xff]
    %v62 = vld [vmem:[#allocation5 + $0x18] sm:$0xff]
    %v63 = vld [vmem:[#allocation7] sm:$0xff]
    %v64 = vld [vmem:[#allocation7 + $0x8] sm:$0xff]
    %v65 = vld [vmem:[#allocation7 + $0x10] sm:$0xff]
    %v66 = vld [vmem:[#allocation7 + $0x18] sm:$0xff]
    %vm67 = vcmask 261120
    %v69 = vsel %vm67, %v57, 0
    %71 = vmatprep.subr.mxu0 0.0
    %72 = vmatpush1.msra.mxu0 %v63
    %73 = vmatprep.subr.mxu0 0.0
    %74 = vmatpush1.msra.mxu0 %v64
    %75 = vmatprep.subr.mxu0 0.0
    %76 = vmatpush1.msra.mxu0 %v65
    %77 = vmatprep.subr.mxu0 0.0
    %78 = vmatpush1.msra.mxu0 %v66
    %79 = vmatprep.subr.mxu0 0.0
    %80 = vmatpush1.msra.mxu0 0.0
    %81 = vmatprep.subr.mxu0 0.0
    %82 = vmatpush1.msra.mxu0 0.0
    %83 = vmatprep.subr.mxu0 0.0
    %84 = vmatpush1.msra.mxu0 0.0
    %85 = vmatprep.subr.mxu0 0.0
    %86 = vmatpush1.msra.mxu0 0.0
    %87 = vmatprep.subr.mxu0 0.0
    %88 = vmatpush1.msra.mxu0 0.0
    %89 = vmatprep.subr.mxu0 0.0
    %90 = vmatpush1.msra.mxu0 0.0
    %91 = vmatprep.subr.mxu0 0.0
    %92 = vmatpush1.msra.mxu0 0.0
    %93 = vmatprep.subr.mxu0 0.0
    %94 = vmatpush1.msra.mxu0 0.0
    %95 = vmatprep.subr.mxu0 0.0
    %96 = vmatpush1.msra.mxu0 0.0
    %97 = vmatprep.subr.mxu0 0.0
    %98 = vmatpush1.msra.mxu0 0.0
    %99 = vmatprep.subr.mxu0 0.0
    %100 = vmatpush1.msra.mxu0 0.0
    %101 = vmatprep.subr.mxu0 0.0
    %102 = vmatpush1.msra.mxu0 0.0
    %103 = vmatprep.subr.mxu0 0.0
    %104 = vmatpush1.msra.mxu0 0.0
    %105 = vmatprep.subr.mxu0 0.0
    %106 = vmatpush1.msra.mxu0 0.0
    %107 = vmatprep.subr.mxu0 0.0
    %108 = vmatpush1.msra.mxu0 0.0
    %109 = vmatprep.subr.mxu0 0.0
    %110 = vmatpush1.msra.mxu0 0.0
    %111 = vmatprep.subr.mxu0 0.0
    %112 = vmatpush1.msra.mxu0 0.0
    %113 = vmatprep.subr.mxu0 0.0
    %114 = vmatpush1.msra.mxu0 0.0
    %115 = vmatprep.subr.mxu0 0.0
    %116 = vmatpush1.msra.mxu0 0.0
    %117 = vmatprep.subr.mxu0 0.0
    %118 = vmatpush1.msra.mxu0 0.0
    %119 = vmatprep.subr.mxu0 0.0
    %120 = vmatpush1.msra.mxu0 0.0
    %121 = vmatprep.subr.mxu0 0.0
    %122 = vmatpush1.msra.mxu0 0.0
    %123 = vmatprep.subr.mxu0 0.0
    %124 = vmatpush1.msra.mxu0 0.0
    %125 = vmatprep.subr.mxu0 0.0
    %126 = vmatpush1.msra.mxu0 0.0
    %127 = vmatprep.subr.mxu0 0.0
    %128 = vmatpush1.msra.mxu0 0.0
    %129 = vmatprep.subr.mxu0 0.0
    %130 = vmatpush1.msra.mxu0 0.0
    %131 = vmatprep.subr.mxu0 0.0
    %132 = vmatpush1.msra.mxu0 0.0
    %133 = vmatprep.subr.mxu0 0.0
    %134 = vmatpush1.msra.mxu0 0.0
    %135 = vmatprep.mubr.f32.mxu0 0.0
    %136 = vmatmul.mubr.f32.gmra.mrb[0].mxu0 %v69
    %v137 = vpop.f32.mrb[0].mxu0
    %v138 = vadd.f32 0.0, %v137
    %v139 = vpop.f32.mrb[0].mxu0
    %140 = vdwg.mxu0
    %v142 = vsel %vm67, %v58, 0
    %144 = vmatprep.subr.mxu0 0.0
    %145 = vmatpush1.msra.mxu0 %v59
    %146 = vmatprep.subr.mxu0 0.0
    %147 = vmatpush1.msra.mxu0 %v60
    %148 = vmatprep.subr.mxu0 0.0
    %149 = vmatpush1.msra.mxu0 %v61
    %150 = vmatprep.subr.mxu0 0.0
    %151 = vmatpush1.msra.mxu0 %v62
    %152 = vmatprep.subr.mxu0 0.0
    %153 = vmatpush1.msra.mxu0 0.0
    %154 = vmatprep.subr.mxu0 0.0
    %155 = vmatpush1.msra.mxu0 0.0
    %156 = vmatprep.subr.mxu0 0.0
    %157 = vmatpush1.msra.mxu0 0.0
    %158 = vmatprep.subr.mxu0 0.0
    %159 = vmatpush1.msra.mxu0 0.0
    %160 = vmatprep.subr.mxu0 0.0
    %161 = vmatpush1.msra.mxu0 0.0
    %162 = vmatprep.subr.mxu0 0.0
    %163 = vmatpush1.msra.mxu0 0.0
    %164 = vmatprep.subr.mxu0 0.0
    %165 = vmatpush1.msra.mxu0 0.0
    %166 = vmatprep.subr.mxu0 0.0
    %167 = vmatpush1.msra.mxu0 0.0
    %168 = vmatprep.subr.mxu0 0.0
    %169 = vmatpush1.msra.mxu0 0.0
    %170 = vmatprep.subr.mxu0 0.0
    %171 = vmatpush1.msra.mxu0 0.0
    %172 = vmatprep.subr.mxu0 0.0
    %173 = vmatpush1.msra.mxu0 0.0
    %174 = vmatprep.subr.mxu0 0.0
    %175 = vmatpush1.msra.mxu0 0.0
    %176 = vmatprep.subr.mxu0 0.0
    %177 = vmatpush1.msra.mxu0 0.0
    %178 = vmatprep.subr.mxu0 0.0
    %179 = vmatpush1.msra.mxu0 0.0
    %180 = vmatprep.subr.mxu0 0.0
    %181 = vmatpush1.msra.mxu0 0.0
    %182 = vmatprep.subr.mxu0 0.0
    %183 = vmatpush1.msra.mxu0 0.0
    %184 = vmatprep.subr.mxu0 0.0
    %185 = vmatpush1.msra.mxu0 0.0
    %186 = vmatprep.subr.mxu0 0.0
    %187 = vmatpush1.msra.mxu0 0.0
    %188 = vmatprep.subr.mxu0 0.0
    %189 = vmatpush1.msra.mxu0 0.0
    %190 = vmatprep.subr.mxu0 0.0
    %191 = vmatpush1.msra.mxu0 0.0
    %192 = vmatprep.subr.mxu0 0.0
    %193 = vmatpush1.msra.mxu0 0.0
    %194 = vmatprep.subr.mxu0 0.0
    %195 = vmatpush1.msra.mxu0 0.0
    %196 = vmatprep.subr.mxu0 0.0
    %197 = vmatpush1.msra.mxu0 0.0
    %198 = vmatprep.subr.mxu0 0.0
    %199 = vmatpush1.msra.mxu0 0.0
    %200 = vmatprep.subr.mxu0 0.0
    %201 = vmatpush1.msra.mxu0 0.0
    %202 = vmatprep.subr.mxu0 0.0
    %203 = vmatpush1.msra.mxu0 0.0
    %204 = vmatprep.subr.mxu0 0.0
    %205 = vmatpush1.msra.mxu0 0.0
    %206 = vmatprep.subr.mxu0 0.0
    %207 = vmatpush1.msra.mxu0 0.0
    %208 = vmatprep.mubr.f32.mxu0 0.0
    %209 = vmatmul.mubr.f32.gmra.mrb[0].mxu0 %v142
    %v210 = vpop.f32.mrb[0].mxu0
    %v211 = vadd.f32 %v138, %v210
    %v212 = vpop.f32.mrb[0].mxu0
    %213 = vdwg.mxu0
    %v214 = vld [vmem:[%s3] sm:$0x1]
    %v215 = vlaneseq
    %v216 = vshrl.u32 %v215, 7
    %v217 = vsub.s32 0, %v216
    %v218 = vrot.slane %v214, %v217
    %v219 = vadd.f32 %v211, %v218
    %220 = vst [vmem:[#allocation8] sm:$0xff] %v219
    // Predicated region
    $region30: #{tpu_custom_call.1} parent=1 // pred_check
      _
    $region31: #{tpu_custom_call.1} parent=1 // pred_check_branch
      %222 = sbr.rel (0) target = $region33
    $region32: #{tpu_custom_call.1} parent=1 // pred_region
      %s224 = ssub.s32 128, 128
      %225 = vsyncadd [#allocation4], %s224
      %s227 = sshll.u32 [#allocation8], 4
      %s228 = int_to_ptr.vmem [resolvable:$true] %s227
      %230 = dma.vmem_to_hbm [thread:$0]  %s228, 128, %s4, [#allocation4]
    $region33: #{tpu_custom_call.1} parent=1 // pred_fallthru
      _
    // Predicated region
    $region34: #{tpu_custom_call.1} parent=1 // pred_check
      _
    $region35: #{tpu_custom_call.1} parent=1 // pred_check_branch
      %232 = sbr.rel (0) target = $region37
    $region36: #{tpu_custom_call.1} parent=1 // pred_region
      %233 = dma.done [#allocation4], 128
    $region37: #{tpu_custom_call.1} parent=1 // pred_fallthru
      _
    %234 = vsyncpa [#allocation3], 1
    %235 = vsyncpa [#allocation6], 1
    %236 = vsyncpa [#allocation4], 1

</llo_original>
